<compile_context>
chip_gen: v5e
topology: v5e:2x2
jax: 0.10.0
libtpu: 0.0.40
codegen_flags: <defaults>
</compile_context>

<pallas_src>
import jax
import jax.numpy as jnp
from jax.experimental import pallas as pl
from jax.experimental.pallas import tpu as pltpu
from math import ceil


def _round_up(a, b):
    return ((a + b - 1) // b) * b


def ts_segment(x, seq_len, seg_len):
    """JAX/Pallas equivalent of TS_Segment.forward.

    x:       [B, emb_d, ts_len, ts_d]   (ts_len == seq_len)
    returns: [B, emb_d, seg_num, seg_len, ts_d]
    """
    B, D, T, C = x.shape
    assert T == seq_len, "ts_len must equal the configured seq_len"
    seg_num = ceil(seq_len / seg_len)
    T_pad = seg_num * seg_len
    pad_len = T_pad - T

    M = B * D                    # independent "rows" (batch * d_model)
    Cin = T * C                  # contiguous (time, channel) plane per row
    Cout = T_pad * C
    pad_cols = Cout - Cin

    # [B, D, T, C] -> [B*D, T*C]: pure row-major reshape, no data movement.
    x2 = x.reshape(M, Cin)

    # Row-tile: multiple of 8 sublanes, sized so the double-buffered
    # (input + output) block pair stays comfortably inside the 32 MiB
    # scoped-VMEM default on every TPU generation, and capped so the
    # parallel grid keeps >= 2 steps (v7x has 2 TensorCores).
    itemsize = jnp.dtype(x.dtype).itemsize
    bytes_per_row = (Cin + Cout) * itemsize
    budget = 4 * 1024 * 1024                     # per-step block-pair budget
    TM = max(8, (budget // bytes_per_row) // 8 * 8)
    TM = min(TM, _round_up(M, 8))
    if M >= 16:
        TM = min(TM, _round_up((M + 1) // 2, 8))

    M_pad = _round_up(M, TM)
    if M_pad != M:
        x2 = jnp.pad(x2, ((0, M_pad - M), (0, 0)))

    def kernel(x_ref, o_ref):
        # Copy the real samples (full-width, lane-dense load + store).
        o_ref[:, :Cin] = x_ref[...]
        if pad_cols:
            # Zero-fill the padded tail of the time axis.
            o_ref[:, Cin:] = jnp.zeros((o_ref.shape[0], pad_cols), o_ref.dtype)

    out = pl.pallas_call(
        kernel,
        out_shape=jax.ShapeDtypeStruct((M_pad, Cout), x.dtype),
        grid_spec=pltpu.PrefetchScalarGridSpec(
            num_scalar_prefetch=0,
            grid=(M_pad // TM,),
            in_specs=[pl.BlockSpec((TM, Cin), lambda i: (i, 0))],
            out_specs=pl.BlockSpec((TM, Cout), lambda i: (i, 0)),
        ),
        compiler_params=pltpu.CompilerParams(
            dimension_semantics=("parallel",)),
    )(x2)

    if M_pad != M:
        out = out[:M]
    # rearrange 'b d (seg_num seg_len) c -> b d seg_num seg_len c' is free.
    return out.reshape(B, D, seg_num, seg_len, C)


if __name__ == "__main__":
    # Small shapes consistent with the module: batch=2, emb_d=32, seq_len=16,
    # ts_d=8.  seg_len=6 exercises the zero-padding path (pad_len=2);
    # seg_len=4 exercises the pad-free path.
    B, D, T, C = 2, 32, 16, 8
    key = jax.random.PRNGKey(0)
    x = jax.random.normal(key, (B, D, T, C), dtype=jnp.float32)

    ok = True
    for seg_len in (6, 4):
        seg_num = ceil(T / seg_len)
        pad_len = seg_num * seg_len - T

        out = jax.block_until_ready(ts_segment(x, T, seg_len))

        # pure-JAX reference of the same forward pass
        ref = jnp.pad(x, ((0, 0), (0, 0), (0, pad_len), (0, 0)))
        ref = ref.reshape(B, D, seg_num, seg_len, C)

        ok &= out.shape == (B, D, seg_num, seg_len, C)
        ok &= bool(jnp.array_equal(out, ref))

    assert ok
    print("KERNEL_OK")
</pallas_src>

<mosaic_0001>
module attributes {stable_mosaic.version = 11 : i64} {
  func.func @kernel(%arg0: i32, %arg1: memref<32x128xf32, #tpu.memory_space<vmem>>, %arg2: memref<32x144xf32, #tpu.memory_space<vmem>>) attributes {dimension_semantics = [#tpu.dimension_semantics<parallel>], iteration_bounds = array<i64: 2>, scalar_prefetch = 0 : i64, scratch_operands = 0 : i64, tpu.core_type = #tpu.core_type<tc>, window_params = [{transform_indices = @transform_0, window_bounds = array<i64: 32, 128>}, {transform_indices = @transform_1, window_bounds = array<i64: 32, 144>}]} {
    %c0 = arith.constant 0 : index
    %c0_0 = arith.constant 0 : index
    %0 = vector.load %arg1[%c0, %c0_0] : memref<32x128xf32, #tpu.memory_space<vmem>>, vector<32x128xf32>
    %c0_1 = arith.constant 0 : index
    %c0_2 = arith.constant 0 : index
    %1 = vector.load %arg2[%c0_1, %c0_2] : memref<32x144xf32, #tpu.memory_space<vmem>>, vector<32x128xf32>
    tpu.vector_store %arg2[%c0_1, %c0_2], %0 {strides = array<i32>} : memref<32x144xf32, #tpu.memory_space<vmem>>, vector<32x128xf32>,
    %cst = arith.constant 0.000000e+00 : f32
    %2 = vector.broadcast %cst : f32 to vector<32x16xf32>
    %c0_3 = arith.constant 0 : index
    %c128 = arith.constant 128 : index
    %3 = vector.load %arg2[%c0_3, %c128] : memref<32x144xf32, #tpu.memory_space<vmem>>, vector<32x16xf32>
    tpu.vector_store %arg2[%c0_3, %c128], %2 {strides = array<i32>} : memref<32x144xf32, #tpu.memory_space<vmem>>, vector<32x16xf32>,
    return
  }
  func.func @transform_0(%arg0: i32) -> (i32, i32) {
    %c0_i32 = arith.constant 0 : i32
    %c0_i32_0 = arith.constant 0 : i32
    return %arg0, %c0_i32 : i32, i32
  }
  func.func @transform_1(%arg0: i32) -> (i32, i32) {
    %c0_i32 = arith.constant 0 : i32
    %c0_i32_0 = arith.constant 0 : i32
    return %arg0, %c0_i32 : i32, i32
  }
}

</mosaic_0001>

<llo_original>
// kernel: tpu_custom_call.1
$region0: #{tpu_custom_call.1}
  #allocation0 [shape = 'u32[]', space=smem, size = 0x4, offset = 0x4, fixed_abs, tag = 'smem constant byte address 0x4 - core index']
  #allocation1 [shape = 'u32[72,128]{1,0:T(1,128)}', space=vmem, size = 0x9000, scoped, tag = 'internal scratch']
  %s0 = inlined_call_operand.hbm [shape: f32[64,128], index: 0, kind: input, shape index: {}]
  %s1 = inlined_call_operand.hbm [shape: f32[64,144], index: 1, kind: output, shape index: {}]
  %s2 = sld [smem:[#allocation0]]
  $region41: #{tpu_custom_call.1} parent=0
    _
  %s4 = ssub.s32 1, %s2
  %s5 = scalar_select 0, %s4, %s2
  $region1: #{tpu_custom_call.1} parent=0
    #allocation2 [shape = 'u8[32768]{0}', space=vmem, size = 0x8000, scoped, tag = 'input window, operand 0']
    #allocation3 [shape = 's32[2]{0}', space=sflag, size = 0x8, scoped, tag = 'scoped memory for tpu_custom_call.1']
    #allocation4 [shape = 's32[2]{0}', space=sflag, size = 0x8, scoped, tag = 'scoped memory for tpu_custom_call.1']
    #allocation5 [shape = 'u8[65536]{0}', space=vmem, size = 0x10000, scoped, tag = 'output window, operand 0']
    %6 = vsyncpa [#allocation3], 0
    %s7 = scalar_lea.sflag [#allocation3], 1
    %8 = vsyncpa %s7, 0
    %9 = vsyncpa [#allocation4], 0
    %s10 = scalar_lea.sflag [#allocation4], 1
    %11 = vsyncpa %s10, 0
    loop: start=0, step=1, limit=4
    $region2: #{tpu_custom_call.1} parent=1 // loop_pre_header
      _
    $region3: #{tpu_custom_call.1} parent=1 // loop_header
      %s13 = sphi 0, %s17
      %p14 = scmp.ge.s32.totalorder %s13, 4
      %s23 = sphi 0, %s25
      %s26 = sphi 0, %s23
      %s27 = sphi 0, %s26
      %s43 = sphi 0, %s27
      %s49 = sphi 0, %s51
      %s52 = sphi 0, %s49
      %s53 = sphi 0, %s52
      %s69 = sphi 0, %s53
    $region4: #{tpu_custom_call.1} parent=1 // loop_header_branch
      %16 = sbr.rel (%p14) target = $region8
    $region5: #{tpu_custom_call.1} parent=1 // loop_body
      %s18 = ssub.s32 %s13, 1
      %s19 = ssub.s32 %s13, 2
      %s20 = sadd.s32 %s13, 1
      %s21 = ssub.s32 %s13, %s20
      %p22 = scmp.eq.s32.totalorder %s21, 0
      %s24 = sadd.s32 %s23, 1
      %s25 = scalar_select %p22, %s23, %s24
      %p28 = pneg %p22
      %p29 = scmp.eq.s32.totalorder %s13, 1
      %p30 = por %p28, %p29
      %p31 = scmp.ne.s32.totalorder %s23, %s26
      %p32 = scmp.eq.s32.totalorder %s13, 0
      %p33 = por %p31, %p32
      %p34 = scmp.ne.s32.totalorder %s23, %s26
      %p35 = scmp.eq.s32.totalorder %s18, 1
      %p36 = por %p34, %p35
      %p37 = scmp.ne.s32.totalorder %s26, %s27
      %p38 = scmp.eq.s32.totalorder %s18, 0
      %p39 = por %p37, %p38
      %p40 = scmp.ne.s32.totalorder %s26, %s27
      %p41 = scmp.eq.s32.totalorder %s19, 1
      %p42 = por %p40, %p41
      %p44 = scmp.ne.s32.totalorder %s27, %s43
      %p45 = scmp.eq.s32.totalorder %s19, 0
      %p46 = por %p44, %p45
      %s47 = ssub.s32 %s13, %s20
      %p48 = scmp.eq.s32.totalorder %s47, 0
      %s50 = sadd.s32 %s49, 1
      %s51 = scalar_select %p48, %s49, %s50
      %p54 = pneg %p48
      %p55 = scmp.eq.s32.totalorder %s13, 1
      %p56 = por %p54, %p55
      %p57 = scmp.ne.s32.totalorder %s49, %s52
      %p58 = scmp.eq.s32.totalorder %s13, 0
      %p59 = por %p57, %p58
      %p60 = scmp.ne.s32.totalorder %s49, %s52
      %p61 = scmp.eq.s32.totalorder %s18, 1
      %p62 = por %p60, %p61
      %p63 = scmp.ne.s32.totalorder %s52, %s53
      %p64 = scmp.eq.s32.totalorder %s18, 0
      %p65 = por %p63, %p64
      %p66 = scmp.ne.s32.totalorder %s52, %s53
      %p67 = scmp.eq.s32.totalorder %s19, 1
      %p68 = por %p66, %p67
      %p70 = scmp.ne.s32.totalorder %s53, %s69
      %p71 = scmp.eq.s32.totalorder %s19, 0
      %p72 = por %p70, %p71
      %p73 = scmp.le.s32.totalorder 1, %s13
      %p74 = scmp.lt.s32.totalorder %s13, 3
      %p75 = pnand %p73, %p74
      %p76 = pneg %p75
      // Predicated region
      $region9: #{tpu_custom_call.1} parent=5 // pred_check
        _
      $region10: #{tpu_custom_call.1} parent=5 // pred_check_branch
        %78 = sbr.rel (%p75) target = $region12
      $region11: #{tpu_custom_call.1} parent=5 // pred_region
        %s79 = ssub.s32 %s13, 1
      $region12: #{tpu_custom_call.1} parent=5 // pred_fallthru
        _
      %p80 = scmp.lt.s32.totalorder %s13, 2
      // Predicated region
      $region13: #{tpu_custom_call.1} parent=5 // pred_check
        %p81 = pneg %p80
      $region14: #{tpu_custom_call.1} parent=5 // pred_check_branch
        %83 = sbr.rel (%p81) target = $region16
      $region15: #{tpu_custom_call.1} parent=5 // pred_region
        // Predicated region
        $region17: #{tpu_custom_call.1} parent=15 // pred_check
          %p84 = pneg %p33
        $region18: #{tpu_custom_call.1} parent=15 // pred_check_branch
          %86 = sbr.rel (%p84) target = $region20
        $region19: #{tpu_custom_call.1} parent=15 // pred_region
          %s87 = sand.u32 %s23, 1
          %s88 = scalar_lea.sflag [#allocation3], %s87
          %s89 = sand.u32 %s23, 1
          %s90 = smul.addr %s89, 32
          %s91 = scalar_lea.vmem [#allocation2], %s90
          %s92 = smul.u32 4, %s13
          %94 = vsyncadd %s88, 0
          %s95 = smul.addr %s92, 8
          %s96 = scalar_lea.hbm %s0, %s95
          %s97 = sshll.u32 %s96, 4
          %s98 = int_to_ptr.hbm [resolvable:$true] %s97
          %s99 = sshll.u32 %s91, 4
          %s100 = int_to_ptr.vmem [resolvable:$true] %s99
          %105 = dma.hbm_to_vmem [thread:$0]  %s98, 512, %s100, %s88, 128, 128, 8
        $region20: #{tpu_custom_call.1} parent=15 // pred_fallthru
          _
      $region16: #{tpu_custom_call.1} parent=5 // pred_fallthru
        _
      %p106 = scmp.le.s32.totalorder 1, %s13
      %p107 = scmp.lt.s32.totalorder %s13, 3
      %p108 = pnand %p106, %p107
      %p109 = pneg %p108
      // Predicated region
      $region21: #{tpu_custom_call.1} parent=5 // pred_check
        _
      $region22: #{tpu_custom_call.1} parent=5 // pred_check_branch
        %111 = sbr.rel (%p108) target = $region24
      $region23: #{tpu_custom_call.1} parent=5 // pred_region
        %s112 = ssub.s32 %s13, 1
        %s113 = sand.u32 %s26, 1
        %s114 = scalar_lea.sflag [#allocation3], %s113
        %s115 = sand.u32 %s26, 1
        %s116 = smul.addr %s115, 32
        %s117 = scalar_lea.vmem [#allocation2], %s116
        // Predicated region
        $region25: #{tpu_custom_call.1} parent=23 // pred_check
          %p118 = pneg %p39
        $region26: #{tpu_custom_call.1} parent=23 // pred_check_branch
          %120 = sbr.rel (%p118) target = $region28
        $region27: #{tpu_custom_call.1} parent=23 // pred_region
          %122 = dma.done %s114, 512
        $region28: #{tpu_custom_call.1} parent=23 // pred_fallthru
          _
        %s123 = sand.u32 %s26, 1
        %s124 = scalar_lea.sflag [#allocation3], %s123
        %s125 = sand.u32 %s26, 1
        %s126 = smul.addr %s125, 32
        %s127 = scalar_lea.vmem [#allocation2], %s126
        %p128 = pneg %p39
        %p129 = pneg %p36
        %p130 = pneg %p65
        %p131 = pneg %p62
        %s132 = sand.u32 %s52, 1
        %s133 = scalar_lea.sflag [#allocation4], %s132
        %s134 = sand.u32 %s52, 1
        %s135 = smul.addr %s134, 64
        %s136 = scalar_lea.vmem [#allocation5], %s135
        %s137 = smul.u32 4, %s18
        %s138 = smul.u32 4, %s18
        %v139 = vld [vmem:[%s117] sm:$0xff]
        %v140 = vld [vmem:[%s117 + $0x8] sm:$0xff]
        %v141 = vld [vmem:[%s117 + $0x10] sm:$0xff]
        %v142 = vld [vmem:[%s117 + $0x18] sm:$0xff]
        %143 = vst [vmem:[%s136] sm:$0xff] %v139
        %144 = vst [vmem:[%s136 + $0x10] sm:$0xff] %v140
        %145 = vst [vmem:[%s136 + $0x20] sm:$0xff] %v141
        %146 = vst [vmem:[%s136 + $0x30] sm:$0xff] %v142
        %vm147 = vcmask 130048
        %148 = vst.msk [vmem:[%s136 + $0x8] sm:$0xff] %vm147, 0.0
        %149 = vst.msk [vmem:[%s136 + $0x18] sm:$0xff] %vm147, 0.0
        %150 = vst.msk [vmem:[%s136 + $0x28] sm:$0xff] %vm147, 0.0
        %151 = vst.msk [vmem:[%s136 + $0x38] sm:$0xff] %vm147, 0.0
        %s152 = sand.u32 %s52, 1
        %s153 = scalar_lea.sflag [#allocation4], %s152
        %s154 = sand.u32 %s52, 1
        %s155 = smul.addr %s154, 64
        %s156 = scalar_lea.vmem [#allocation5], %s155
        // Predicated region
        $region29: #{tpu_custom_call.1} parent=23 // pred_check
          %p157 = pneg %p62
        $region30: #{tpu_custom_call.1} parent=23 // pred_check_branch
          %159 = sbr.rel (%p157) target = $region32
        $region31: #{tpu_custom_call.1} parent=23 // pred_region
          %s160 = smul.u32 4, %s18
          %162 = vsyncadd %s153, 0
          %s163 = smul.addr %s160, 2
          %s164 = smul.addr %s163, 8
          %s165 = scalar_lea.hbm %s1, %s164
          %s166 = sshll.u32 %s156, 4
          %s167 = int_to_ptr.vmem [resolvable:$true] %s166
          %s168 = sshll.u32 %s165, 4
          %s169 = int_to_ptr.hbm [resolvable:$true] %s168
          %174 = dma.vmem_to_hbm [thread:$0]  %s167, 1024, %s169, %s153, 256, 256, 16
        $region32: #{tpu_custom_call.1} parent=23 // pred_fallthru
          _
      $region24: #{tpu_custom_call.1} parent=5 // pred_fallthru
        _
      %p175 = scmp.le.s32.totalorder 2, %s13
      // Predicated region
      $region33: #{tpu_custom_call.1} parent=5 // pred_check
        %p176 = pneg %p175
      $region34: #{tpu_custom_call.1} parent=5 // pred_check_branch
        %178 = sbr.rel (%p176) target = $region36
      $region35: #{tpu_custom_call.1} parent=5 // pred_region
        %s179 = ssub.s32 %s13, 2
        // Predicated region
        $region37: #{tpu_custom_call.1} parent=35 // pred_check
          %p180 = pneg %p68
        $region38: #{tpu_custom_call.1} parent=35 // pred_check_branch
          %182 = sbr.rel (%p180) target = $region40
        $region39: #{tpu_custom_call.1} parent=35 // pred_region
          %s183 = sand.u32 %s53, 1
          %s184 = scalar_lea.sflag [#allocation4], %s183
          %s185 = sand.u32 %s53, 1
          %s186 = smul.addr %s185, 64
          %s187 = scalar_lea.vmem [#allocation5], %s186
          %189 = dma.done %s184, 1024
        $region40: #{tpu_custom_call.1} parent=35 // pred_fallthru
          _
      $region36: #{tpu_custom_call.1} parent=5 // pred_fallthru
        _
    $region6: #{tpu_custom_call.1} parent=1 // loop_footer
      %s17 = sadd.s32 1, %s13
    $region7: #{tpu_custom_call.1} parent=1 // loop_footer_branch
      %12 = sbr.rel target = $region3
    $region8: #{tpu_custom_call.1} parent=1 // loop_exit
      _
    %190 = vsyncpa [#allocation3], 1
    %s191 = scalar_lea.sflag [#allocation3], 1
    %192 = vsyncpa %s191, 1
    %193 = vsyncpa [#allocation4], 1
    %s194 = scalar_lea.sflag [#allocation4], 1
    %195 = vsyncpa %s194, 1

</llo_original>
